<compile_context>
chip_gen: v5e
topology: v5e:2x2
jax: 0.10.0
libtpu: 0.0.40
codegen_flags: <defaults>
</compile_context>

<pallas_src>
import jax
import jax.numpy as jnp
from jax.experimental import pallas as pl
from jax.experimental.pallas import tpu as pltpu

HIDDEN = 256  # fixed by the module: nn.Linear(input_dim, 256)


def pvg_kernel(x_ref, w1_ref, b1_ref, w2_ref, b2_ref, out_ref, acc_ref):
    k = pl.program_id(1)

    @pl.when(k == 0)
    def _init():
        acc_ref[...] = jnp.zeros_like(acc_ref)

    # First Linear, K-tiled over input_dim: f32 operands, f32 MXU accumulation.
    acc_ref[...] += jnp.dot(x_ref[...], w1_ref[...],
                            preferred_element_type=jnp.float32)

    @pl.when(k == pl.num_programs(1) - 1)
    def _finalize():
        # ReLU (VPU) then second Linear (MXU), fused — hidden never leaves VMEM.
        h = jnp.maximum(acc_ref[...] + b1_ref[...], 0.0)
        out = jnp.dot(h, w2_ref[...], preferred_element_type=jnp.float32)
        out_ref[...] = (out + b2_ref[...]).astype(out_ref.dtype)


def _round_up(x, m):
    return (x + m - 1) // m * m


def personalized_vector_generator(client_info, w1, b1, w2, b2,
                                  *, max_tk=4096, max_tb=256):
    """Pallas forward of PersonalizedVectorGenerator.

    client_info: (B, input_dim) or (input_dim,)
    w1: (input_dim, 256), b1: (256,), w2: (256, output_dim), b2: (output_dim,)
    """
    squeeze = client_info.ndim == 1
    x = client_info.reshape(1, -1) if squeeze else client_info
    x = x.astype(jnp.float32)

    B, D_in = x.shape
    D_out = w2.shape[1]
    D_out_pad = max(_round_up(D_out, 128), 128)     # lane-dense output stores

    # --- K (input_dim) tiling: one step if it fits, bounded tiles otherwise ---
    d_in_128 = _round_up(D_in, 128)
    tk = d_in_128 if d_in_128 <= max_tk else max_tk
    D_in_pad = _round_up(D_in, tk)
    num_k = D_in_pad // tk

    # --- batch tiling: sublane-aligned, "parallel" for megacore on v7x ---
    B8 = _round_up(B, 8)
    if B8 <= max_tb:
        tb, B_pad = B8, B8
    else:
        tb = max_tb
        B_pad = _round_up(B, tb)
    num_b = B_pad // tb

    # Zero-pad operands (padded rows/cols contribute exactly zero / are sliced off).
    x_p = jnp.pad(x, ((0, B_pad - B), (0, D_in_pad - D_in)))
    w1_p = jnp.pad(w1.astype(jnp.float32), ((0, D_in_pad - D_in), (0, 0)))
    b1_p = b1.astype(jnp.float32).reshape(1, HIDDEN)
    w2_p = jnp.pad(w2.astype(jnp.float32), ((0, 0), (0, D_out_pad - D_out)))
    b2_p = jnp.pad(b2.astype(jnp.float32), (0, D_out_pad - D_out)).reshape(1, D_out_pad)

    grid_spec = pltpu.PrefetchScalarGridSpec(
        num_scalar_prefetch=0,
        grid=(num_b, num_k),
        in_specs=[
            pl.BlockSpec((tb, tk), lambda b, k: (b, k)),             # x
            pl.BlockSpec((tk, HIDDEN), lambda b, k: (k, 0)),         # W1
            pl.BlockSpec((1, HIDDEN), lambda b, k: (0, 0)),          # b1
            pl.BlockSpec((HIDDEN, D_out_pad), lambda b, k: (0, 0)),  # W2
            pl.BlockSpec((1, D_out_pad), lambda b, k: (0, 0)),       # b2
        ],
        out_specs=pl.BlockSpec((tb, D_out_pad), lambda b, k: (b, 0)),
        scratch_shapes=[pltpu.VMEM((tb, HIDDEN), jnp.float32)],      # hidden accum
    )

    out = pl.pallas_call(
        pvg_kernel,
        out_shape=jax.ShapeDtypeStruct((B_pad, D_out_pad), jnp.float32),
        grid_spec=grid_spec,
        compiler_params=pltpu.CompilerParams(
            dimension_semantics=("parallel", "arbitrary")),
    )(x_p, w1_p, b1_p, w2_p, b2_p)

    out = out[:B, :D_out]
    return out[0] if squeeze else out


def personalized_vector_generator_ref(client_info, w1, b1, w2, b2):
    """Pure-JAX reference: Linear(D,256) -> ReLU -> Linear(256,D)."""
    x = client_info.astype(jnp.float32)
    h = jnp.maximum(x @ w1 + b1, 0.0)
    return h @ w2 + b2


if __name__ == "__main__":
    # Small deterministic shapes consistent with the module.
    B = 8             # batch of client_info vectors
    D_IN = 128        # input_dim  (client-info / personalization dim)
    D_OUT = 128       # output_dim (== input_dim in FedCP usage)

    key = jax.random.PRNGKey(0)
    k0, k1, k2, k3, k4, k5 = jax.random.split(key, 6)

    w1 = jax.random.normal(k0, (D_IN, HIDDEN), jnp.float32) * 0.05
    b1 = jax.random.normal(k1, (HIDDEN,), jnp.float32) * 0.01
    w2 = jax.random.normal(k2, (HIDDEN, D_OUT), jnp.float32) * 0.05
    b2 = jax.random.normal(k3, (D_OUT,), jnp.float32) * 0.01

    x_batch = jax.random.normal(k4, (B, D_IN), jnp.float32)
    x_single = jax.random.normal(k5, (D_IN,), jnp.float32)

    out_b = jax.block_until_ready(
        personalized_vector_generator(x_batch, w1, b1, w2, b2))
    out_s = jax.block_until_ready(
        personalized_vector_generator(x_single, w1, b1, w2, b2))

    ref_b = personalized_vector_generator_ref(x_batch, w1, b1, w2, b2)
    ref_s = personalized_vector_generator_ref(x_single, w1, b1, w2, b2)

    assert out_b.shape == (B, D_OUT)
    assert out_s.shape == (D_OUT,)
    assert jnp.allclose(out_b, ref_b, rtol=1e-5, atol=1e-5), "batched mismatch"
    assert jnp.allclose(out_s, ref_s, rtol=1e-5, atol=1e-5), "single-vector mismatch"

    print("KERNEL_OK")
</pallas_src>

<mosaic_0001>
module attributes {stable_mosaic.version = 11 : i64} {
  func.func @pvg_kernel(%arg0: i32, %arg1: i32, %arg2: memref<8x128xf32, #tpu.memory_space<vmem>>, %arg3: memref<128x256xf32, #tpu.memory_space<vmem>>, %arg4: memref<1x256xf32, #tpu.memory_space<vmem>>, %arg5: memref<256x128xf32, #tpu.memory_space<vmem>>, %arg6: memref<1x128xf32, #tpu.memory_space<vmem>>, %arg7: memref<8x128xf32, #tpu.memory_space<vmem>>, %arg8: memref<8x256xf32, #tpu.memory_space<vmem>>) attributes {dimension_semantics = [#tpu.dimension_semantics<parallel>, #tpu.dimension_semantics<arbitrary>], iteration_bounds = array<i64: 1, 1>, scalar_prefetch = 0 : i64, scratch_operands = 1 : i64, tpu.core_type = #tpu.core_type<tc>, window_params = [{transform_indices = @transform_0, window_bounds = array<i64: 8, 128>}, {transform_indices = @transform_1, window_bounds = array<i64: 128, 256>}, {pipeline_mode = #tpu.pipeline_mode<synchronous>, transform_indices = @transform_2, window_bounds = array<i64: 1, 256>}, {pipeline_mode = #tpu.pipeline_mode<synchronous>, transform_indices = @transform_3, window_bounds = array<i64: 256, 128>}, {pipeline_mode = #tpu.pipeline_mode<synchronous>, transform_indices = @transform_4, window_bounds = array<i64: 1, 128>}, {transform_indices = @transform_5, window_bounds = array<i64: 8, 128>}]} {
    %c0_i32 = arith.constant 0 : i32
    %0 = arith.cmpi eq, %arg1, %c0_i32 : i32
    %1 = arith.extui %0 : i1 to i32
    %c0_i32_0 = arith.constant 0 : i32
    %2 = arith.cmpi ne, %1, %c0_i32_0 : i32
    scf.if %2 {
      %cst_10 = arith.constant 0.000000e+00 : f32
      %12 = vector.broadcast %cst_10 : f32 to vector<8x256xf32>
      %c0_11 = arith.constant 0 : index
      %c0_12 = arith.constant 0 : index
      %13 = vector.load %arg8[%c0_11, %c0_12] : memref<8x256xf32, #tpu.memory_space<vmem>>, vector<8x256xf32>
      tpu.vector_store %arg8[%c0_11, %c0_12], %12 {strides = array<i32>} : memref<8x256xf32, #tpu.memory_space<vmem>>, vector<8x256xf32>,
    } else {
    }
    %c0 = arith.constant 0 : index
    %c0_1 = arith.constant 0 : index
    %3 = vector.load %arg8[%c0, %c0_1] : memref<8x256xf32, #tpu.memory_space<vmem>>, vector<8x256xf32>
    %c0_2 = arith.constant 0 : index
    %c0_3 = arith.constant 0 : index
    %4 = vector.load %arg2[%c0_2, %c0_3] : memref<8x128xf32, #tpu.memory_space<vmem>>, vector<8x128xf32>
    %c0_4 = arith.constant 0 : index
    %c0_5 = arith.constant 0 : index
    %5 = vector.load %arg3[%c0_4, %c0_5] : memref<128x256xf32, #tpu.memory_space<vmem>>, vector<128x256xf32>
    %cst = arith.constant dense<0.000000e+00> : vector<8x256xf32>
    %6 = tpu.matmul %4, %5, %cst {dimension_numbers = #tpu.dot_dimension_numbers<[1], [0], [0], [1], [0, 0, 1, 1], [], []>} : vector<8x128xf32>, vector<128x256xf32>, vector<8x256xf32> -> vector<8x256xf32>
    %7 = arith.addf %3, %6 : vector<8x256xf32>
    %c0_6 = arith.constant 0 : index
    %c0_7 = arith.constant 0 : index
    %8 = vector.load %arg8[%c0_6, %c0_7] : memref<8x256xf32, #tpu.memory_space<vmem>>, vector<8x256xf32>
    tpu.vector_store %arg8[%c0_6, %c0_7], %7 {strides = array<i32>} : memref<8x256xf32, #tpu.memory_space<vmem>>, vector<8x256xf32>,
    %c0_i32_8 = arith.constant 0 : i32
    %9 = arith.cmpi eq, %arg1, %c0_i32_8 : i32
    %10 = arith.extui %9 : i1 to i32
    %c0_i32_9 = arith.constant 0 : i32
    %11 = arith.cmpi ne, %10, %c0_i32_9 : i32
    scf.if %11 {
      %c0_10 = arith.constant 0 : index
      %c0_11 = arith.constant 0 : index
      %12 = vector.load %arg8[%c0_10, %c0_11] : memref<8x256xf32, #tpu.memory_space<vmem>>, vector<8x256xf32>
      %c0_12 = arith.constant 0 : index
      %c0_13 = arith.constant 0 : index
      %13 = vector.load %arg4[%c0_12, %c0_13] : memref<1x256xf32, #tpu.memory_space<vmem>>, vector<1x256xf32>
      %14 = vector.broadcast %13 : vector<1x256xf32> to vector<8x256xf32>
      %15 = arith.addf %12, %14 : vector<8x256xf32>
      %cst_14 = arith.constant 0.000000e+00 : f32
      %16 = vector.broadcast %cst_14 : f32 to vector<8x256xf32>
      %17 = arith.maximumf %15, %16 : vector<8x256xf32>
      %c0_15 = arith.constant 0 : index
      %c0_16 = arith.constant 0 : index
      %18 = vector.load %arg5[%c0_15, %c0_16] : memref<256x128xf32, #tpu.memory_space<vmem>>, vector<256x128xf32>
      %cst_17 = arith.constant dense<0.000000e+00> : vector<8x128xf32>
      %19 = tpu.matmul %17, %18, %cst_17 {dimension_numbers = #tpu.dot_dimension_numbers<[1], [0], [0], [1], [0, 0, 1, 1], [], []>} : vector<8x256xf32>, vector<256x128xf32>, vector<8x128xf32> -> vector<8x128xf32>
      %c0_18 = arith.constant 0 : index
      %c0_19 = arith.constant 0 : index
      %20 = vector.load %arg6[%c0_18, %c0_19] : memref<1x128xf32, #tpu.memory_space<vmem>>, vector<1x128xf32>
      %21 = vector.broadcast %20 : vector<1x128xf32> to vector<8x128xf32>
      %22 = arith.addf %19, %21 : vector<8x128xf32>
      %c0_20 = arith.constant 0 : index
      %c0_21 = arith.constant 0 : index
      %23 = vector.load %arg7[%c0_20, %c0_21] : memref<8x128xf32, #tpu.memory_space<vmem>>, vector<8x128xf32>
      tpu.vector_store %arg7[%c0_20, %c0_21], %22 {strides = array<i32>} : memref<8x128xf32, #tpu.memory_space<vmem>>, vector<8x128xf32>,
    } else {
    }
    return
  }
  func.func @transform_0(%arg0: i32, %arg1: i32) -> (i32, i32) {
    %c0_i32 = arith.constant 0 : i32
    return %arg0, %arg1 : i32, i32
  }
  func.func @transform_1(%arg0: i32, %arg1: i32) -> (i32, i32) {
    %c0_i32 = arith.constant 0 : i32
    %c0_i32_0 = arith.constant 0 : i32
    return %arg1, %c0_i32 : i32, i32
  }
  func.func @transform_2(%arg0: i32, %arg1: i32) -> (i32, i32) {
    %c0_i32 = arith.constant 0 : i32
    %c0_i32_0 = arith.constant 0 : i32
    %c0_i32_1 = arith.constant 0 : i32
    return %c0_i32, %c0_i32_0 : i32, i32
  }
  func.func @transform_3(%arg0: i32, %arg1: i32) -> (i32, i32) {
    %c0_i32 = arith.constant 0 : i32
    %c0_i32_0 = arith.constant 0 : i32
    %c0_i32_1 = arith.constant 0 : i32
    return %c0_i32, %c0_i32_0 : i32, i32
  }
  func.func @transform_4(%arg0: i32, %arg1: i32) -> (i32, i32) {
    %c0_i32 = arith.constant 0 : i32
    %c0_i32_0 = arith.constant 0 : i32
    %c0_i32_1 = arith.constant 0 : i32
    return %c0_i32, %c0_i32_0 : i32, i32
  }
  func.func @transform_5(%arg0: i32, %arg1: i32) -> (i32, i32) {
    %c0_i32 = arith.constant 0 : i32
    %c0_i32_0 = arith.constant 0 : i32
    return %arg0, %c0_i32 : i32, i32
  }
}

</mosaic_0001>

<llo_original>
// kernel: tpu_custom_call.1
$region0: #{tpu_custom_call.1}
  #allocation0 [shape = 'u32[]', space=smem, size = 0x4, offset = 0x4, fixed_abs, tag = 'smem constant byte address 0x4 - core index']
  #allocation1 [shape = 'u32[72,128]{1,0:T(1,128)}', space=vmem, size = 0x9000, scoped, tag = 'internal scratch']
  #allocation2 [shape = 'f32[8,256]{1,0:T(8,128)}', space=vmem, size = 0x2000, scoped, tag = 'scratch operand']
  %s0 = inlined_call_operand.hbm [shape: f32[8,128], index: 0, kind: input, shape index: {}]
  %s1 = inlined_call_operand.hbm [shape: f32[128,256], index: 1, kind: input, shape index: {}]
  %s2 = inlined_call_operand.hbm [shape: f32[1,256], index: 2, kind: input, shape index: {}]
  %s3 = inlined_call_operand.hbm [shape: f32[256,128], index: 3, kind: input, shape index: {}]
  %s4 = inlined_call_operand.vmem [shape: f32[1,128], index: 4, kind: input, shape index: {}]
  %s5 = inlined_call_operand.hbm [shape: f32[8,128], index: 5, kind: output, shape index: {}]
  %s6 = sld [smem:[#allocation0]]
  $region54: #{tpu_custom_call.1} parent=0
    _
  %s8 = ssub.s32 1, %s6
  %s9 = scalar_select 0, %s8, %s6
  $region1: #{tpu_custom_call.1} parent=0
    #allocation3 [shape = 'u8[4096]{0}', space=vmem, size = 0x1000, scoped, tag = 'input window, operand 0, single buffered']
    #allocation4 [shape = 's32[1]{0}', space=sflag, size = 0x4, scoped, tag = 'scoped memory for tpu_custom_call.1']
    #allocation5 [shape = 's32[1]{0}', space=sflag, size = 0x4, scoped, tag = 'scoped memory for tpu_custom_call.1']
    #allocation6 [shape = 'u8[131072]{0}', space=vmem, size = 0x20000, scoped, tag = 'input window, operand 1, single buffered']
    #allocation7 [shape = 's32[1]{0}', space=sflag, size = 0x4, scoped, tag = 'scoped memory for tpu_custom_call.1']
    #allocation8 [shape = 'u8[1024]{0}', space=vmem, size = 0x400, scoped, tag = 'input window, operand 2, single buffered']
    #allocation9 [shape = 'u8[131072]{0}', space=vmem, size = 0x20000, scoped, tag = 'input window, operand 3, single buffered']
    #allocation10 [shape = 's32[1]{0}', space=sflag, size = 0x4, scoped, tag = 'scoped memory for tpu_custom_call.1']
    #allocation11 [shape = 'u8[4096]{0}', space=vmem, size = 0x1000, scoped, tag = 'output window, operand 0, single buffered']
    %10 = vsyncpa [#allocation4], 0
    %11 = vsyncpa [#allocation7], 0
    %12 = vsyncpa [#allocation10], 0
    %13 = vsyncpa [#allocation5], 0
    // Predicated region
    $region2: #{tpu_custom_call.1} parent=1 // pred_check
      _
    $region3: #{tpu_custom_call.1} parent=1 // pred_check_branch
      %15 = sbr.rel (0) target = $region5
    $region4: #{tpu_custom_call.1} parent=1 // pred_region
      %17 = vsyncadd [#allocation4], 0
      %s19 = sshll.u32 %s0, 4
      %s20 = int_to_ptr.hbm [resolvable:$true] %s19
      %s21 = sshll.u32 [#allocation3], 4
      %s22 = int_to_ptr.vmem [resolvable:$true] %s21
      %24 = dma.hbm_to_vmem [thread:$0]  %s20, 128, %s22, [#allocation4]
    $region5: #{tpu_custom_call.1} parent=1 // pred_fallthru
      _
    // Predicated region
    $region6: #{tpu_custom_call.1} parent=1 // pred_check
      _
    $region7: #{tpu_custom_call.1} parent=1 // pred_check_branch
      %26 = sbr.rel (0) target = $region9
    $region8: #{tpu_custom_call.1} parent=1 // pred_region
      %28 = vsyncadd [#allocation7], 0
      %s29 = sshll.u32 %s1, 4
      %s30 = int_to_ptr.hbm [resolvable:$true] %s29
      %s31 = sshll.u32 [#allocation6], 4
      %s32 = int_to_ptr.vmem [resolvable:$true] %s31
      %37 = dma.hbm_to_vmem [thread:$0]  %s30, 4096, %s32, [#allocation7], 256, 256, 16
    $region9: #{tpu_custom_call.1} parent=1 // pred_fallthru
      _
    // Predicated region
    $region10: #{tpu_custom_call.1} parent=1 // pred_check
      _
    $region11: #{tpu_custom_call.1} parent=1 // pred_check_branch
      %39 = sbr.rel (0) target = $region13
    $region12: #{tpu_custom_call.1} parent=1 // pred_region
      %41 = vsyncadd [#allocation7], 0
      %s43 = sshll.u32 %s2, 4
      %s44 = int_to_ptr.hbm [resolvable:$true] %s43
      %s45 = sshll.u32 [#allocation8], 4
      %s46 = int_to_ptr.vmem [resolvable:$true] %s45
      %48 = dma.hbm_to_vmem [thread:$0]  %s44, 32, %s46, [#allocation7]
    $region13: #{tpu_custom_call.1} parent=1 // pred_fallthru
      _
    // Predicated region
    $region14: #{tpu_custom_call.1} parent=1 // pred_check
      _
    $region15: #{tpu_custom_call.1} parent=1 // pred_check_branch
      %50 = sbr.rel (0) target = $region17
    $region16: #{tpu_custom_call.1} parent=1 // pred_region
      %52 = vsyncadd [#allocation10], 0
      %s53 = sshll.u32 %s3, 4
      %s54 = int_to_ptr.hbm [resolvable:$true] %s53
      %s55 = sshll.u32 [#allocation9], 4
      %s56 = int_to_ptr.vmem [resolvable:$true] %s55
      %61 = dma.hbm_to_vmem [thread:$0]  %s54, 4096, %s56, [#allocation10], 128, 128, 8
    $region17: #{tpu_custom_call.1} parent=1 // pred_fallthru
      _
    // Predicated region
    $region18: #{tpu_custom_call.1} parent=1 // pred_check
      _
    $region19: #{tpu_custom_call.1} parent=1 // pred_check_branch
      %63 = sbr.rel (0) target = $region21
    $region20: #{tpu_custom_call.1} parent=1 // pred_region
      _
    $region21: #{tpu_custom_call.1} parent=1 // pred_fallthru
      _
    // Predicated region
    $region22: #{tpu_custom_call.1} parent=1 // pred_check
      _
    $region23: #{tpu_custom_call.1} parent=1 // pred_check_branch
      %65 = sbr.rel (0) target = $region25
    $region24: #{tpu_custom_call.1} parent=1 // pred_region
      %67 = dma.done [#allocation4], 128
    $region25: #{tpu_custom_call.1} parent=1 // pred_fallthru
      _
    // Predicated region
    $region26: #{tpu_custom_call.1} parent=1 // pred_check
      _
    $region27: #{tpu_custom_call.1} parent=1 // pred_check_branch
      %69 = sbr.rel (0) target = $region29
    $region28: #{tpu_custom_call.1} parent=1 // pred_region
      %71 = dma.done [#allocation7], 4096
    $region29: #{tpu_custom_call.1} parent=1 // pred_fallthru
      _
    // Predicated region
    $region30: #{tpu_custom_call.1} parent=1 // pred_check
      _
    $region31: #{tpu_custom_call.1} parent=1 // pred_check_branch
      %73 = sbr.rel (0) target = $region33
    $region32: #{tpu_custom_call.1} parent=1 // pred_region
      %75 = dma.done [#allocation7], 32
    $region33: #{tpu_custom_call.1} parent=1 // pred_fallthru
      _
    // Predicated region
    $region34: #{tpu_custom_call.1} parent=1 // pred_check
      _
    $region35: #{tpu_custom_call.1} parent=1 // pred_check_branch
      %77 = sbr.rel (0) target = $region37
    $region36: #{tpu_custom_call.1} parent=1 // pred_region
      %79 = dma.done [#allocation10], 4096
    $region37: #{tpu_custom_call.1} parent=1 // pred_fallthru
      _
    %p80 = scmp.eq.s32.totalorder 0, 0
    // Predicated region
    $region38: #{tpu_custom_call.1} parent=1 // pred_check
      %p81 = pneg %p80
    $region39: #{tpu_custom_call.1} parent=1 // pred_check_branch
      %83 = sbr.rel (%p81) target = $region41
    $region40: #{tpu_custom_call.1} parent=1 // pred_region
      %84 = vst [vmem:[#allocation2] sm:$0xff] 0.0
      %85 = vst [vmem:[#allocation2 + $0x8] sm:$0xff] 0.0
    $region41: #{tpu_custom_call.1} parent=1 // pred_fallthru
      _
    %v86 = vld [vmem:[#allocation2] sm:$0xff]
    %v87 = vld [vmem:[#allocation2 + $0x8] sm:$0xff]
    %v88 = vld [vmem:[#allocation3] sm:$0xff]
    %v89 = vld [vmem:[#allocation6] sm:$0xff]
    %v90 = vld [vmem:[#allocation6 + $0x8] sm:$0xff]
    %v91 = vld [vmem:[#allocation6 + $0x10] sm:$0xff]
    %v92 = vld [vmem:[#allocation6 + $0x18] sm:$0xff]
    %v93 = vld [vmem:[#allocation6 + $0x20] sm:$0xff]
    %v94 = vld [vmem:[#allocation6 + $0x28] sm:$0xff]
    %v95 = vld [vmem:[#allocation6 + $0x30] sm:$0xff]
    %v96 = vld [vmem:[#allocation6 + $0x38] sm:$0xff]
    %v97 = vld [vmem:[#allocation6 + $0x40] sm:$0xff]
    %v98 = vld [vmem:[#allocation6 + $0x48] sm:$0xff]
    %v99 = vld [vmem:[#allocation6 + $0x50] sm:$0xff]
    %v100 = vld [vmem:[#allocation6 + $0x58] sm:$0xff]
    %v101 = vld [vmem:[#allocation6 + $0x60] sm:$0xff]
    %v102 = vld [vmem:[#allocation6 + $0x68] sm:$0xff]
    %v103 = vld [vmem:[#allocation6 + $0x70] sm:$0xff]
    %v104 = vld [vmem:[#allocation6 + $0x78] sm:$0xff]
    %v105 = vld [vmem:[#allocation6 + $0x80] sm:$0xff]
    %v106 = vld [vmem:[#allocation6 + $0x88] sm:$0xff]
    %v107 = vld [vmem:[#allocation6 + $0x90] sm:$0xff]
    %v108 = vld [vmem:[#allocation6 + $0x98] sm:$0xff]
    %v109 = vld [vmem:[#allocation6 + $0xa0] sm:$0xff]
    %v110 = vld [vmem:[#allocation6 + $0xa8] sm:$0xff]
    %v111 = vld [vmem:[#allocation6 + $0xb0] sm:$0xff]
    %v112 = vld [vmem:[#allocation6 + $0xb8] sm:$0xff]
    %v113 = vld [vmem:[#allocation6 + $0xc0] sm:$0xff]
    %v114 = vld [vmem:[#allocation6 + $0xc8] sm:$0xff]
    %v115 = vld [vmem:[#allocation6 + $0xd0] sm:$0xff]
    %v116 = vld [vmem:[#allocation6 + $0xd8] sm:$0xff]
    %v117 = vld [vmem:[#allocation6 + $0xe0] sm:$0xff]
    %v118 = vld [vmem:[#allocation6 + $0xe8] sm:$0xff]
    %v119 = vld [vmem:[#allocation6 + $0xf0] sm:$0xff]
    %v120 = vld [vmem:[#allocation6 + $0xf8] sm:$0xff]
    %121 = vmatpush.msra.mxu0 %v119
    %122 = vmatpush.msra.mxu0 %v117
    %123 = vmatpush.msra.mxu0 %v115
    %124 = vmatpush.msra.mxu0 %v113
    %125 = vmatpush.msra.mxu0 %v111
    %126 = vmatpush.msra.mxu0 %v109
    %127 = vmatpush.msra.mxu0 %v107
    %128 = vmatpush.msra.mxu0 %v105
    %129 = vmatpush.msra.mxu0 %v103
    %130 = vmatpush.msra.mxu0 %v101
    %131 = vmatpush.msra.mxu0 %v99
    %132 = vmatpush.msra.mxu0 %v97
    %133 = vmatpush.msra.mxu0 %v95
    %134 = vmatpush.msra.mxu0 %v93
    %135 = vmatpush.msra.mxu0 %v91
    %136 = vmatpush.msra.mxu0 %v89
    %137 = vmatmul.f32.gmra.mxu0 %v88
    %v138 = vpop.f32.mrf.mxu0
    %v139 = vadd.f32 0.0, %v138
    %140 = vdwg.mxu0
    %141 = vmatpush.msra.mxu0 %v120
    %142 = vmatpush.msra.mxu0 %v118
    %143 = vmatpush.msra.mxu0 %v116
    %144 = vmatpush.msra.mxu0 %v114
    %145 = vmatpush.msra.mxu0 %v112
    %146 = vmatpush.msra.mxu0 %v110
    %147 = vmatpush.msra.mxu0 %v108
    %148 = vmatpush.msra.mxu0 %v106
    %149 = vmatpush.msra.mxu0 %v104
    %150 = vmatpush.msra.mxu0 %v102
    %151 = vmatpush.msra.mxu0 %v100
    %152 = vmatpush.msra.mxu0 %v98
    %153 = vmatpush.msra.mxu0 %v96
    %154 = vmatpush.msra.mxu0 %v94
    %155 = vmatpush.msra.mxu0 %v92
    %156 = vmatpush.msra.mxu0 %v90
    %157 = vmatmul.f32.gmra.mxu0 %v88
    %v158 = vpop.f32.mrf.mxu0
    %v159 = vadd.f32 0.0, %v158
    %160 = vdwg.mxu0
    %v161 = vadd.f32 %v86, %v139
    %v162 = vadd.f32 %v87, %v159
    %163 = vst [vmem:[#allocation2] sm:$0xff] %v161
    %164 = vst [vmem:[#allocation2 + $0x8] sm:$0xff] %v162
    // Predicated region
    $region42: #{tpu_custom_call.1} parent=1 // pred_check
      %p165 = pneg %p80
    $region43: #{tpu_custom_call.1} parent=1 // pred_check_branch
      %167 = sbr.rel (%p165) target = $region45
    $region44: #{tpu_custom_call.1} parent=1 // pred_region
      %v168 = vld [vmem:[#allocation2] sm:$0xff]
      %v169 = vld [vmem:[#allocation2 + $0x8] sm:$0xff]
      %v170 = vld [vmem:[#allocation8] sm:$0x3]
      %v172 = vperm.slane %v170, 0
      %v173 = vperm.slane %v170, 1
      %v176 = vadd.f32 %v168, %v172
      %v177 = vadd.f32 %v169, %v173
      %v178 = vmax.f32 %v176, 0.0
      %v179 = vmax.f32 %v177, 0.0
      %v180 = vld [vmem:[#allocation9] sm:$0xff]
      %v181 = vld [vmem:[#allocation9 + $0x8] sm:$0xff]
      %v182 = vld [vmem:[#allocation9 + $0x10] sm:$0xff]
      %v183 = vld [vmem:[#allocation9 + $0x18] sm:$0xff]
      %v184 = vld [vmem:[#allocation9 + $0x20] sm:$0xff]
      %v185 = vld [vmem:[#allocation9 + $0x28] sm:$0xff]
      %v186 = vld [vmem:[#allocation9 + $0x30] sm:$0xff]
      %v187 = vld [vmem:[#allocation9 + $0x38] sm:$0xff]
      %v188 = vld [vmem:[#allocation9 + $0x40] sm:$0xff]
      %v189 = vld [vmem:[#allocation9 + $0x48] sm:$0xff]
      %v190 = vld [vmem:[#allocation9 + $0x50] sm:$0xff]
      %v191 = vld [vmem:[#allocation9 + $0x58] sm:$0xff]
      %v192 = vld [vmem:[#allocation9 + $0x60] sm:$0xff]
      %v193 = vld [vmem:[#allocation9 + $0x68] sm:$0xff]
      %v194 = vld [vmem:[#allocation9 + $0x70] sm:$0xff]
      %v195 = vld [vmem:[#allocation9 + $0x78] sm:$0xff]
      %v196 = vld [vmem:[#allocation9 + $0x80] sm:$0xff]
      %v197 = vld [vmem:[#allocation9 + $0x88] sm:$0xff]
      %v198 = vld [vmem:[#allocation9 + $0x90] sm:$0xff]
      %v199 = vld [vmem:[#allocation9 + $0x98] sm:$0xff]
      %v200 = vld [vmem:[#allocation9 + $0xa0] sm:$0xff]
      %v201 = vld [vmem:[#allocation9 + $0xa8] sm:$0xff]
      %v202 = vld [vmem:[#allocation9 + $0xb0] sm:$0xff]
      %v203 = vld [vmem:[#allocation9 + $0xb8] sm:$0xff]
      %v204 = vld [vmem:[#allocation9 + $0xc0] sm:$0xff]
      %v205 = vld [vmem:[#allocation9 + $0xc8] sm:$0xff]
      %v206 = vld [vmem:[#allocation9 + $0xd0] sm:$0xff]
      %v207 = vld [vmem:[#allocation9 + $0xd8] sm:$0xff]
      %v208 = vld [vmem:[#allocation9 + $0xe0] sm:$0xff]
      %v209 = vld [vmem:[#allocation9 + $0xe8] sm:$0xff]
      %v210 = vld [vmem:[#allocation9 + $0xf0] sm:$0xff]
      %v211 = vld [vmem:[#allocation9 + $0xf8] sm:$0xff]
      %v212 = vld [vmem:[%s4] sm:$0x1]
      %v214 = vperm.slane %v212, 0
      %216 = vmatpush.msra.mxu0 %v195
      %217 = vmatpush.msra.mxu0 %v194
      %218 = vmatpush.msra.mxu0 %v193
      %219 = vmatpush.msra.mxu0 %v192
      %220 = vmatpush.msra.mxu0 %v191
      %221 = vmatpush.msra.mxu0 %v190
      %222 = vmatpush.msra.mxu0 %v189
      %223 = vmatpush.msra.mxu0 %v188
      %224 = vmatpush.msra.mxu0 %v187
      %225 = vmatpush.msra.mxu0 %v186
      %226 = vmatpush.msra.mxu0 %v185
      %227 = vmatpush.msra.mxu0 %v184
      %228 = vmatpush.msra.mxu0 %v183
      %229 = vmatpush.msra.mxu0 %v182
      %230 = vmatpush.msra.mxu0 %v181
      %231 = vmatpush.msra.mxu0 %v180
      %232 = vmatmul.f32.gmra.mxu0 %v178
      %v233 = vpop.f32.mrf.mxu0
      %v234 = vadd.f32 %v214, %v233
      %235 = vdwg.mxu0
      %236 = vmatpush.msra.mxu0 %v211
      %237 = vmatpush.msra.mxu0 %v210
      %238 = vmatpush.msra.mxu0 %v209
      %239 = vmatpush.msra.mxu0 %v208
      %240 = vmatpush.msra.mxu0 %v207
      %241 = vmatpush.msra.mxu0 %v206
      %242 = vmatpush.msra.mxu0 %v205
      %243 = vmatpush.msra.mxu0 %v204
      %244 = vmatpush.msra.mxu0 %v203
      %245 = vmatpush.msra.mxu0 %v202
      %246 = vmatpush.msra.mxu0 %v201
      %247 = vmatpush.msra.mxu0 %v200
      %248 = vmatpush.msra.mxu0 %v199
      %249 = vmatpush.msra.mxu0 %v198
      %250 = vmatpush.msra.mxu0 %v197
      %251 = vmatpush.msra.mxu0 %v196
      %252 = vmatmul.f32.gmra.mxu0 %v179
      %v253 = vpop.f32.mrf.mxu0
      %v254 = vadd.f32 %v234, %v253
      %255 = vdwg.mxu0
      %256 = vst [vmem:[#allocation11] sm:$0xff] %v254
    $region45: #{tpu_custom_call.1} parent=1 // pred_fallthru
      _
    // Predicated region
    $region46: #{tpu_custom_call.1} parent=1 // pred_check
      _
    $region47: #{tpu_custom_call.1} parent=1 // pred_check_branch
      %258 = sbr.rel (0) target = $region49
    $region48: #{tpu_custom_call.1} parent=1 // pred_region
      %260 = vsyncadd [#allocation5], 0
      %s262 = sshll.u32 [#allocation11], 4
      %s263 = int_to_ptr.vmem [resolvable:$true] %s262
      %s264 = sshll.u32 %s5, 4
      %s265 = int_to_ptr.hbm [resolvable:$true] %s264
      %267 = dma.vmem_to_hbm [thread:$0]  %s263, 128, %s265, [#allocation5]
    $region49: #{tpu_custom_call.1} parent=1 // pred_fallthru
      _
    // Predicated region
    $region50: #{tpu_custom_call.1} parent=1 // pred_check
      _
    $region51: #{tpu_custom_call.1} parent=1 // pred_check_branch
      %269 = sbr.rel (0) target = $region53
    $region52: #{tpu_custom_call.1} parent=1 // pred_region
      %271 = dma.done [#allocation5], 128
    $region53: #{tpu_custom_call.1} parent=1 // pred_fallthru
      _
    %272 = vsyncpa [#allocation4], 1
    %273 = vsyncpa [#allocation7], 1
    %274 = vsyncpa [#allocation10], 1
    %275 = vsyncpa [#allocation5], 1

</llo_original>
